<compile_context>
chip_gen: v7x
topology: tpu7x:2x2x1
jax: 0.10.0
libtpu: 0.0.40
codegen_flags: <defaults>
</compile_context>

<pallas_src>
import functools

import jax
import jax.numpy as jnp
from jax.experimental import pallas as pl
from jax.experimental.pallas import tpu as pltpu

_LANE = 512            # lane width of the streamed slab (multiple of 128)
_MAX_TILE_ROWS = 1024  # rows per grid step (multiple of 8); 1024*512*4B = 2 MiB / input / buffer


def _capsule_loss_kernel(classes_ref, labels_ref, img_ref, rec_ref, out_ref,
                         acc_ref, *, batch):
    i = pl.program_id(0)

    @pl.when(i == 0)
    def _init():
        acc_ref[...] = jnp.zeros_like(acc_ref)

    # Streaming reconstruction term: cast-to-f32 + multiply-add only (pure
    # VPU); no cross-lane reduction inside the hot loop.
    d = rec_ref[...].astype(jnp.float32) - img_ref[...].astype(jnp.float32)
    acc_ref[...] += d * d

    @pl.when(i == pl.num_programs(0) - 1)
    def _finalize():
        # Single full reduction in the epilogue.
        recon_sum = jnp.sum(acc_ref[...])

        # Margin loss on the tiny (B, K) classes/labels (resident every step;
        # computed once here).
        classes = classes_ref[...].astype(jnp.float32)
        labels = labels_ref[...].astype(jnp.float32)
        left = jnp.maximum(0.9 - classes, 0.0)
        right = jnp.maximum(classes - 0.1, 0.0)
        margin = labels * (left * left) + 0.5 * (1.0 - labels) * (right * right)
        margin_sum = jnp.sum(margin)

        out_ref[0, 0] = (margin_sum + 0.0005 * recon_sum) / jnp.float32(batch)


def capsule_loss(images, labels, classes, reconstructions):
    """images/reconstructions: (B, C, H, W); labels, classes: (B, K)."""
    B = images.shape[0]
    K = classes.shape[1]

    # Flatten to a lane/sublane-dense slab; keep the native HBM dtype so the
    # kernel streams the minimum number of bytes (f32 upcast happens in-vreg).
    img_flat = images.reshape(-1)
    rec_flat = reconstructions.reshape(-1)
    n = img_flat.shape[0]

    rows = pl.cdiv(n, _LANE)
    tile_rows = min(_MAX_TILE_ROWS, ((rows + 7) // 8) * 8)
    padded_rows = ((rows + tile_rows - 1) // tile_rows) * tile_rows
    padded_n = padded_rows * _LANE
    if padded_n != n:
        # Zero padding on BOTH arrays -> diff == 0 there, SSE unchanged.
        img_flat = jnp.pad(img_flat, (0, padded_n - n))
        rec_flat = jnp.pad(rec_flat, (0, padded_n - n))
    img2d = img_flat.reshape(padded_rows, _LANE)
    rec2d = rec_flat.reshape(padded_rows, _LANE)
    num_tiles = padded_rows // tile_rows

    labels = labels.astype(jnp.float32)
    classes = classes.astype(jnp.float32)

    itemsize = jnp.dtype(img2d.dtype).itemsize
    cost = pl.CostEstimate(
        flops=3 * padded_n + 10 * B * K,
        transcendentals=0,
        bytes_accessed=2 * padded_n * itemsize + 2 * B * K * 4 + 4,
    )

    out = pl.pallas_call(
        functools.partial(_capsule_loss_kernel, batch=B),
        out_shape=jax.ShapeDtypeStruct((1, 1), jnp.float32),
        grid_spec=pltpu.PrefetchScalarGridSpec(
            num_scalar_prefetch=0,
            grid=(num_tiles,),
            in_specs=[
                pl.BlockSpec((B, K), lambda i: (0, 0)),            # classes (tiny, whole)
                pl.BlockSpec((B, K), lambda i: (0, 0)),            # labels  (tiny, whole)
                pl.BlockSpec((tile_rows, _LANE), lambda i: (i, 0)),  # images tile
                pl.BlockSpec((tile_rows, _LANE), lambda i: (i, 0)),  # recon tile
            ],
            out_specs=pl.BlockSpec(memory_space=pltpu.MemorySpace.SMEM),
            scratch_shapes=[pltpu.VMEM((tile_rows, _LANE), jnp.float32)],
        ),
        compiler_params=pltpu.CompilerParams(
            dimension_semantics=("arbitrary",),  # reduction axis (accumulator)
        ),
        cost_estimate=cost,
    )(classes, labels, img2d, rec2d)
    return out[0, 0]


def capsule_loss_ref(images, labels, classes, reconstructions):
    """Pure-JAX reference mirroring the PyTorch module."""
    left = jnp.maximum(0.9 - classes, 0.0) ** 2
    right = jnp.maximum(classes - 0.1, 0.0) ** 2
    margin_loss = jnp.sum(labels * left + 0.5 * (1.0 - labels) * right)
    recon_loss = jnp.sum((reconstructions - images) ** 2)
    return (margin_loss + 0.0005 * recon_loss) / images.shape[0]


if __name__ == "__main__":
    key = jax.random.PRNGKey(0)
    k1, k2, k3, k4 = jax.random.split(key, 4)

    B, C, H, W = 2, 4, 16, 16
    K = 10  # number of capsule classes

    images = jax.random.uniform(k1, (B, C, H, W), dtype=jnp.float32)
    reconstructions = jax.random.uniform(k2, (B, C, H, W), dtype=jnp.float32)
    # classes are capsule lengths in [0, 1)
    classes = jax.random.uniform(k3, (B, K), dtype=jnp.float32)
    # one-hot labels
    label_idx = jax.random.randint(k4, (B,), 0, K)
    labels = jax.nn.one_hot(label_idx, K, dtype=jnp.float32)

    loss = capsule_loss(images, labels, classes, reconstructions)
    loss = jax.block_until_ready(loss)

    ref = capsule_loss_ref(
        images.reshape(B, -1), labels, classes, reconstructions.reshape(B, -1)
    )
    assert jnp.allclose(loss, ref, rtol=1e-5, atol=1e-5), (loss, ref)
    print("KERNEL_OK")
</pallas_src>

<mosaic_0001>
module attributes {stable_mosaic.version = 11 : i64} {
  func.func @_capsule_loss_kernel(%arg0: i32, %arg1: memref<2x10xf32, #tpu.memory_space<vmem>>, %arg2: memref<2x10xf32, #tpu.memory_space<vmem>>, %arg3: memref<8x512xf32, #tpu.memory_space<vmem>>, %arg4: memref<8x512xf32, #tpu.memory_space<vmem>>, %arg5: memref<1x1xf32, #tpu.memory_space<smem>>, %arg6: memref<8x512xf32, #tpu.memory_space<vmem>>) attributes {dimension_semantics = [#tpu.dimension_semantics<arbitrary>], iteration_bounds = array<i64: 1>, scalar_prefetch = 0 : i64, scratch_operands = 1 : i64, tpu.core_type = #tpu.core_type<tc>, window_params = [{pipeline_mode = #tpu.pipeline_mode<synchronous>, transform_indices = @transform_0, window_bounds = array<i64: 2, 10>}, {pipeline_mode = #tpu.pipeline_mode<synchronous>, transform_indices = @transform_1, window_bounds = array<i64: 2, 10>}, {transform_indices = @transform_2, window_bounds = array<i64: 8, 512>}, {transform_indices = @transform_3, window_bounds = array<i64: 8, 512>}, {transform_indices = @transform_4, window_bounds = array<i64: 1, 1>}]} {
    %c0_i32 = arith.constant 0 : i32
    %0 = arith.cmpi eq, %arg0, %c0_i32 : i32
    %1 = arith.extui %0 : i1 to i32
    %c0_i32_0 = arith.constant 0 : i32
    %2 = arith.cmpi ne, %1, %c0_i32_0 : i32
    scf.if %2 {
      %cst = arith.constant 0.000000e+00 : f32
      %13 = vector.broadcast %cst : f32 to vector<8x512xf32>
      %c0_10 = arith.constant 0 : index
      %c0_11 = arith.constant 0 : index
      %14 = vector.load %arg6[%c0_10, %c0_11] : memref<8x512xf32, #tpu.memory_space<vmem>>, vector<8x512xf32>
      tpu.vector_store %arg6[%c0_10, %c0_11], %13 {strides = array<i32>} : memref<8x512xf32, #tpu.memory_space<vmem>>, vector<8x512xf32>,
    } else {
    }
    %c0 = arith.constant 0 : index
    %c0_1 = arith.constant 0 : index
    %3 = vector.load %arg4[%c0, %c0_1] : memref<8x512xf32, #tpu.memory_space<vmem>>, vector<8x512xf32>
    %c0_2 = arith.constant 0 : index
    %c0_3 = arith.constant 0 : index
    %4 = vector.load %arg3[%c0_2, %c0_3] : memref<8x512xf32, #tpu.memory_space<vmem>>, vector<8x512xf32>
    %5 = arith.subf %3, %4 : vector<8x512xf32>
    %c0_4 = arith.constant 0 : index
    %c0_5 = arith.constant 0 : index
    %6 = vector.load %arg6[%c0_4, %c0_5] : memref<8x512xf32, #tpu.memory_space<vmem>>, vector<8x512xf32>
    %7 = arith.mulf %5, %5 : vector<8x512xf32>
    %8 = arith.addf %6, %7 : vector<8x512xf32>
    %c0_6 = arith.constant 0 : index
    %c0_7 = arith.constant 0 : index
    %9 = vector.load %arg6[%c0_6, %c0_7] : memref<8x512xf32, #tpu.memory_space<vmem>>, vector<8x512xf32>
    tpu.vector_store %arg6[%c0_6, %c0_7], %8 {strides = array<i32>} : memref<8x512xf32, #tpu.memory_space<vmem>>, vector<8x512xf32>,
    %c0_i32_8 = arith.constant 0 : i32
    %10 = arith.cmpi eq, %arg0, %c0_i32_8 : i32
    %11 = arith.extui %10 : i1 to i32
    %c0_i32_9 = arith.constant 0 : i32
    %12 = arith.cmpi ne, %11, %c0_i32_9 : i32
    scf.if %12 {
      %c0_10 = arith.constant 0 : index
      %c0_11 = arith.constant 0 : index
      %13 = vector.load %arg6[%c0_10, %c0_11] : memref<8x512xf32, #tpu.memory_space<vmem>>, vector<8x512xf32>
      %14 = vector.shape_cast %13 : vector<8x512xf32> to vector<1x8x512xf32>
      %cst = arith.constant dense<0.000000e+00> : vector<1xf32>
      %15 = vector.multi_reduction <add>, %14, %cst [1, 2] : vector<1x8x512xf32> to vector<1xf32>
      %16 = vector.shape_cast %15 : vector<1xf32> to vector<1x1x1xf32>
      %17 = vector.extract %16[0, 0, 0] : f32 from vector<1x1x1xf32>
      %c0_12 = arith.constant 0 : index
      %c0_13 = arith.constant 0 : index
      %18 = vector.load %arg1[%c0_12, %c0_13] : memref<2x10xf32, #tpu.memory_space<vmem>>, vector<2x10xf32>
      %c0_14 = arith.constant 0 : index
      %c0_15 = arith.constant 0 : index
      %19 = vector.load %arg2[%c0_14, %c0_15] : memref<2x10xf32, #tpu.memory_space<vmem>>, vector<2x10xf32>
      %cst_16 = arith.constant 0.899999976 : f32
      %20 = vector.broadcast %cst_16 : f32 to vector<2x10xf32>
      %21 = arith.subf %20, %18 : vector<2x10xf32>
      %cst_17 = arith.constant 0.000000e+00 : f32
      %22 = vector.broadcast %cst_17 : f32 to vector<2x10xf32>
      %23 = arith.maximumf %21, %22 : vector<2x10xf32>
      %cst_18 = arith.constant 1.000000e-01 : f32
      %24 = vector.broadcast %cst_18 : f32 to vector<2x10xf32>
      %25 = arith.subf %18, %24 : vector<2x10xf32>
      %cst_19 = arith.constant 0.000000e+00 : f32
      %26 = vector.broadcast %cst_19 : f32 to vector<2x10xf32>
      %27 = arith.maximumf %25, %26 : vector<2x10xf32>
      %28 = arith.mulf %23, %23 : vector<2x10xf32>
      %29 = arith.mulf %19, %28 : vector<2x10xf32>
      %cst_20 = arith.constant 1.000000e+00 : f32
      %30 = vector.broadcast %cst_20 : f32 to vector<2x10xf32>
      %31 = arith.subf %30, %19 : vector<2x10xf32>
      %cst_21 = arith.constant 5.000000e-01 : f32
      %32 = vector.broadcast %cst_21 : f32 to vector<2x10xf32>
      %33 = arith.mulf %32, %31 : vector<2x10xf32>
      %34 = arith.mulf %27, %27 : vector<2x10xf32>
      %35 = arith.mulf %33, %34 : vector<2x10xf32>
      %36 = arith.addf %29, %35 : vector<2x10xf32>
      %37 = vector.shape_cast %36 : vector<2x10xf32> to vector<1x2x10xf32>
      %cst_22 = arith.constant dense<0.000000e+00> : vector<1xf32>
      %38 = vector.multi_reduction <add>, %37, %cst_22 [1, 2] : vector<1x2x10xf32> to vector<1xf32>
      %39 = vector.shape_cast %38 : vector<1xf32> to vector<1x1x1xf32>
      %40 = vector.extract %39[0, 0, 0] : f32 from vector<1x1x1xf32>
      %cst_23 = arith.constant 5.000000e-04 : f32
      %41 = arith.mulf %cst_23, %17 : f32
      %42 = arith.addf %40, %41 : f32
      %cst_24 = arith.constant 2.000000e+00 : f32
      %43 = arith.divf %42, %cst_24 : f32
      %c0_25 = arith.constant 0 : index
      %c0_26 = arith.constant 0 : index
      %44 = memref.load %arg5[%c0_25, %c0_26] : memref<1x1xf32, #tpu.memory_space<smem>>
      memref.store %43, %arg5[%c0_25, %c0_26] : memref<1x1xf32, #tpu.memory_space<smem>>
    } else {
    }
    return
  }
  func.func @transform_0(%arg0: i32) -> (i32, i32) {
    %c0_i32 = arith.constant 0 : i32
    %c0_i32_0 = arith.constant 0 : i32
    %c0_i32_1 = arith.constant 0 : i32
    return %c0_i32, %c0_i32_0 : i32, i32
  }
  func.func @transform_1(%arg0: i32) -> (i32, i32) {
    %c0_i32 = arith.constant 0 : i32
    %c0_i32_0 = arith.constant 0 : i32
    %c0_i32_1 = arith.constant 0 : i32
    return %c0_i32, %c0_i32_0 : i32, i32
  }
  func.func @transform_2(%arg0: i32) -> (i32, i32) {
    %c0_i32 = arith.constant 0 : i32
    %c0_i32_0 = arith.constant 0 : i32
    return %arg0, %c0_i32 : i32, i32
  }
  func.func @transform_3(%arg0: i32) -> (i32, i32) {
    %c0_i32 = arith.constant 0 : i32
    %c0_i32_0 = arith.constant 0 : i32
    return %arg0, %c0_i32 : i32, i32
  }
  func.func @transform_4(%arg0: i32) -> (i32, i32) {
    %c0_i32 = arith.constant 0 : i32
    %c0_i32_0 = arith.constant 0 : i32
    %c0_i32_1 = arith.constant 0 : i32
    return %c0_i32, %c0_i32_0 : i32, i32
  }
}

</mosaic_0001>

<llo_original>
// kernel: tpu_custom_call.1
$region0: #{tpu_custom_call.1}
  #allocation0 [shape = 'u32[]', space=smem, size = 0x4, offset = 0x4, fixed_abs, tag = 'smem constant byte address 0x4 - core index']
  #allocation1 [shape = 'u32[144,128]{1,0:T(1,128)}', space=vmem, size = 0x12000, scoped, tag = 'internal scratch']
  #allocation2 [shape = 'f32[8,512]{1,0:T(8,128)}', space=vmem, size = 0x4000, scoped, tag = 'scratch operand']
  %s0 = inlined_call_operand.hbm [shape: f32[2,10], index: 0, kind: input, shape index: {}]
  %s1 = inlined_call_operand.vmem [shape: f32[2,10], index: 1, kind: input, shape index: {}]
  %s2 = inlined_call_operand.hbm [shape: f32[8,512], index: 2, kind: input, shape index: {}]
  %s3 = inlined_call_operand.hbm [shape: f32[8,512], index: 3, kind: input, shape index: {}]
  %s4 = inlined_call_operand.hbm [shape: f32[1,1], index: 4, kind: output, shape index: {}]
  %s5 = sld [smem:[#allocation0]]
  $region46: #{tpu_custom_call.1} parent=0
    _
  %s7 = ssub.s32 1, %s5
  %s8 = scalar_select 0, %s7, %s5
  $region1: #{tpu_custom_call.1} parent=0
    #allocation3 [shape = 'u8[1024]{0}', space=vmem, size = 0x400, scoped, tag = 'input window, operand 0, single buffered']
    #allocation4 [shape = 's32[1]{0}', space=sflag, size = 0x4, scoped, tag = 'scoped memory for tpu_custom_call.1']
    #allocation5 [shape = 's32[1]{0}', space=sflag, size = 0x4, scoped, tag = 'scoped memory for tpu_custom_call.1']
    #allocation6 [shape = 'u8[16384]{0}', space=vmem, size = 0x4000, scoped, tag = 'input window, operand 2, single buffered']
    #allocation7 [shape = 's32[1]{0}', space=sflag, size = 0x4, scoped, tag = 'scoped memory for tpu_custom_call.1']
    #allocation8 [shape = 'u8[16384]{0}', space=vmem, size = 0x4000, scoped, tag = 'input window, operand 3, single buffered']
    #allocation9 [shape = 'u8[512]{0}', space=smem, size = 0x200, scoped, tag = 'output window, operand 0, single buffered']
    %9 = vsyncpa [#allocation4], 0
    %10 = vsyncpa [#allocation7], 0
    %11 = vsyncpa [#allocation5], 0
    // Predicated region
    $region2: #{tpu_custom_call.1} parent=1 // pred_check
      _
    $region3: #{tpu_custom_call.1} parent=1 // pred_check_branch
      %13 = sbr.rel (0) target = $region5
    $region4: #{tpu_custom_call.1} parent=1 // pred_region
      %s15 = ssub.s32 32, 32
      %16 = vsyncadd [#allocation4], %s15
      %s18 = sshll.u32 [#allocation3], 4
      %s19 = int_to_ptr.vmem [resolvable:$true] %s18
      %21 = dma.hbm_to_vmem [thread:$0]  %s0, 32, %s19, [#allocation4]
    $region5: #{tpu_custom_call.1} parent=1 // pred_fallthru
      _
    // Predicated region
    $region6: #{tpu_custom_call.1} parent=1 // pred_check
      _
    $region7: #{tpu_custom_call.1} parent=1 // pred_check_branch
      %23 = sbr.rel (0) target = $region9
    $region8: #{tpu_custom_call.1} parent=1 // pred_region
      _
    $region9: #{tpu_custom_call.1} parent=1 // pred_fallthru
      _
    // Predicated region
    $region10: #{tpu_custom_call.1} parent=1 // pred_check
      _
    $region11: #{tpu_custom_call.1} parent=1 // pred_check_branch
      %25 = sbr.rel (0) target = $region13
    $region12: #{tpu_custom_call.1} parent=1 // pred_region
      %s27 = ssub.s32 512, 512
      %28 = vsyncadd [#allocation7], %s27
      %s30 = sshll.u32 [#allocation6], 4
      %s31 = int_to_ptr.vmem [resolvable:$true] %s30
      %33 = dma.hbm_to_vmem [thread:$0]  %s2, 512, %s31, [#allocation7]
    $region13: #{tpu_custom_call.1} parent=1 // pred_fallthru
      _
    // Predicated region
    $region14: #{tpu_custom_call.1} parent=1 // pred_check
      _
    $region15: #{tpu_custom_call.1} parent=1 // pred_check_branch
      %35 = sbr.rel (0) target = $region17
    $region16: #{tpu_custom_call.1} parent=1 // pred_region
      %s37 = ssub.s32 512, 512
      %38 = vsyncadd [#allocation7], %s37
      %s40 = sshll.u32 [#allocation8], 4
      %s41 = int_to_ptr.vmem [resolvable:$true] %s40
      %43 = dma.hbm_to_vmem [thread:$0]  %s3, 512, %s41, [#allocation7]
    $region17: #{tpu_custom_call.1} parent=1 // pred_fallthru
      _
    // Predicated region
    $region18: #{tpu_custom_call.1} parent=1 // pred_check
      _
    $region19: #{tpu_custom_call.1} parent=1 // pred_check_branch
      %45 = sbr.rel (0) target = $region21
    $region20: #{tpu_custom_call.1} parent=1 // pred_region
      %46 = dma.done [#allocation4], 32
    $region21: #{tpu_custom_call.1} parent=1 // pred_fallthru
      _
    // Predicated region
    $region22: #{tpu_custom_call.1} parent=1 // pred_check
      _
    $region23: #{tpu_custom_call.1} parent=1 // pred_check_branch
      %48 = sbr.rel (0) target = $region25
    $region24: #{tpu_custom_call.1} parent=1 // pred_region
      %49 = dma.done [#allocation7], 512
    $region25: #{tpu_custom_call.1} parent=1 // pred_fallthru
      _
    // Predicated region
    $region26: #{tpu_custom_call.1} parent=1 // pred_check
      _
    $region27: #{tpu_custom_call.1} parent=1 // pred_check_branch
      %51 = sbr.rel (0) target = $region29
    $region28: #{tpu_custom_call.1} parent=1 // pred_region
      %52 = dma.done [#allocation7], 512
    $region29: #{tpu_custom_call.1} parent=1 // pred_fallthru
      _
    %p53 = scmp.eq.s32.totalorder 0, 0
    // Predicated region
    $region30: #{tpu_custom_call.1} parent=1 // pred_check
      %p54 = pneg %p53
    $region31: #{tpu_custom_call.1} parent=1 // pred_check_branch
      %56 = sbr.rel (%p54) target = $region33
    $region32: #{tpu_custom_call.1} parent=1 // pred_region
      %57 = vst [vmem:[#allocation2] sm:$0xff] 0.0
      %58 = vst [vmem:[#allocation2 + $0x8] sm:$0xff] 0.0
      %59 = vst [vmem:[#allocation2 + $0x10] sm:$0xff] 0.0
      %60 = vst [vmem:[#allocation2 + $0x18] sm:$0xff] 0.0
    $region33: #{tpu_custom_call.1} parent=1 // pred_fallthru
      _
    %v61 = vld [vmem:[#allocation8] sm:$0xff]
    %v62 = vld [vmem:[#allocation8 + $0x8] sm:$0xff]
    %v63 = vld [vmem:[#allocation8 + $0x10] sm:$0xff]
    %v64 = vld [vmem:[#allocation8 + $0x18] sm:$0xff]
    %v65 = vld [vmem:[#allocation6] sm:$0xff]
    %v66 = vld [vmem:[#allocation6 + $0x8] sm:$0xff]
    %v67 = vld [vmem:[#allocation6 + $0x10] sm:$0xff]
    %v68 = vld [vmem:[#allocation6 + $0x18] sm:$0xff]
    %v69 = vsub.f32 %v61, %v65
    %v70 = vsub.f32 %v62, %v66
    %v71 = vsub.f32 %v63, %v67
    %v72 = vsub.f32 %v64, %v68
    %v73 = vld [vmem:[#allocation2] sm:$0xff]
    %v74 = vld [vmem:[#allocation2 + $0x8] sm:$0xff]
    %v75 = vld [vmem:[#allocation2 + $0x10] sm:$0xff]
    %v76 = vld [vmem:[#allocation2 + $0x18] sm:$0xff]
    %v77 = vmul.f32 %v69, %v69
    %v78 = vmul.f32 %v70, %v70
    %v79 = vmul.f32 %v71, %v71
    %v80 = vmul.f32 %v72, %v72
    %v81 = vadd.f32 %v73, %v77
    %v82 = vadd.f32 %v74, %v78
    %v83 = vadd.f32 %v75, %v79
    %v84 = vadd.f32 %v76, %v80
    %85 = vst [vmem:[#allocation2] sm:$0xff] %v81
    %86 = vst [vmem:[#allocation2 + $0x8] sm:$0xff] %v82
    %87 = vst [vmem:[#allocation2 + $0x10] sm:$0xff] %v83
    %88 = vst [vmem:[#allocation2 + $0x18] sm:$0xff] %v84
    // Predicated region
    $region34: #{tpu_custom_call.1} parent=1 // pred_check
      %p89 = pneg %p53
    $region35: #{tpu_custom_call.1} parent=1 // pred_check_branch
      %91 = sbr.rel (%p89) target = $region37
    $region36: #{tpu_custom_call.1} parent=1 // pred_region
      %v92 = vld [vmem:[#allocation2] sm:$0xff]
      %v93 = vld [vmem:[#allocation2 + $0x8] sm:$0xff]
      %v94 = vld [vmem:[#allocation2 + $0x10] sm:$0xff]
      %v95 = vld [vmem:[#allocation2 + $0x18] sm:$0xff]
      %v96 = vadd.f32 %v92, %v93
      %v97 = vadd.f32 %v96, %v94
      %v98 = vadd.f32 %v97, %v95
      %99 = vadd.xlane.f32.xlu0 %v98
      %v100 = vpop.xlane.xlu0 %99
      %v101 = vrot.slane %v100, 4
      %v102 = vadd.f32 %v100, %v101
      %v103 = vrot.slane %v102, 2
      %v104 = vadd.f32 %v102, %v103
      %v105 = vrot.slane %v104, 1
      %v106 = vadd.f32 %v104, %v105
      %s107 = vtos %v106
      %v108 = vld [vmem:[#allocation3] sm:$0x3]
      %v109 = vld [vmem:[%s1] sm:$0x3]
      %v110 = vsub.f32 0.9, %v108
      %v111 = vmax.f32 %v110, 0.0
      %v112 = vsub.f32 %v108, 0.1
      %v113 = vmax.f32 %v112, 0.0
      %v114 = vmul.f32 %v111, %v111
      %v115 = vmul.f32 %v109, %v114
      %v116 = vsub.f32 1.0, %v109
      %v117 = vmul.f32 %v116, 0.5
      %v118 = vmul.f32 %v113, %v113
      %v119 = vmul.f32 %v117, %v118
      %v120 = vadd.f32 %v115, %v119
      %vm121 = vcmask 74752
      %v122 = vsel %vm121, %v120, 0.0
      %123 = vadd.xlane.f32.xlu0 %v122
      %v124 = vpop.xlane.xlu0 %123
      %v125 = vrot.slane %v124, 4
      %v126 = vadd.f32 %v124, %v125
      %v127 = vrot.slane %v126, 2
      %v128 = vadd.f32 %v126, %v127
      %v129 = vrot.slane %v128, 1
      %v130 = vadd.f32 %v128, %v129
      %s131 = vtos %v130
      %s132 = smul.f32 %s107, 0.0005
      %s133 = sadd.f32 %s131, %s132
      %v134 = vrcp.pop 2.0
      %s135 = vtos %v134
      %s136 = smul.f32 %s133, %s135
      %s137 = scalar_lea.smem [#allocation9], 0
      %138 = sst [smem:[%s137]] %s136
    $region37: #{tpu_custom_call.1} parent=1 // pred_fallthru
      _
    // Predicated region
    $region38: #{tpu_custom_call.1} parent=1 // pred_check
      _
    $region39: #{tpu_custom_call.1} parent=1 // pred_check_branch
      %140 = sbr.rel (0) target = $region41
    $region40: #{tpu_custom_call.1} parent=1 // pred_region
      %s142 = ssub.s32 16, 16
      %143 = vsyncadd [#allocation5], %s142
      %146 = dma.smem_to_hbm [#allocation9], 16, %s4, [#allocation5]
    $region41: #{tpu_custom_call.1} parent=1 // pred_fallthru
      _
    // Predicated region
    $region42: #{tpu_custom_call.1} parent=1 // pred_check
      _
    $region43: #{tpu_custom_call.1} parent=1 // pred_check_branch
      %148 = sbr.rel (0) target = $region45
    $region44: #{tpu_custom_call.1} parent=1 // pred_region
      %149 = dma.done [#allocation5], 16
    $region45: #{tpu_custom_call.1} parent=1 // pred_fallthru
      _
    %150 = sfence
    %151 = vsyncpa [#allocation4], 1
    %152 = vsyncpa [#allocation7], 1
    %153 = vsyncpa [#allocation5], 1

</llo_original>
